<compile_context>
chip_gen: v6e
topology: v6e:2x2x1
jax: 0.10.0
libtpu: 0.0.40
codegen_flags: <defaults>
</compile_context>

<pallas_src>
import functools

import jax
import jax.numpy as jnp
from jax.experimental import pallas as pl
from jax.experimental.pallas import tpu as pltpu


def _linear_kernel(feats_ref, w_ref, out_ref, *, use_bf16_operands):
    # feats_ref: [tm, D_in] VMEM tile, w_ref: [D_in, tn] VMEM tile.
    a = feats_ref[...]
    b = w_ref[...]
    if use_bf16_operands:
        # MXU-native rate on v6e/v7x; accumulation stays f32 below.
        a = a.astype(jnp.bfloat16)
        b = b.astype(jnp.bfloat16)
    out_ref[...] = jnp.dot(
        a, b, preferred_element_type=jnp.float32
    ).astype(out_ref.dtype)


def _pick_tile(dim, pref, align):
    """Largest tile <= pref that is a multiple of `align` and divides `dim`.

    Falls back to the full dimension (always legal: block == full array dim),
    which is what happens for the module's tiny 8x16x32 configuration.
    """
    if dim <= pref:
        return dim
    t = (pref // align) * align
    while t >= align:
        if dim % t == 0:
            return t
        t -= align
    return dim


def prepare_weight(weight):
    """One-time transform of the PyTorch-layout weight [D_out, D_in] into the
    kernel layout [D_in, D_out]. Call this at parameter-init time, not per
    forward, so the transpose + HBM materialization happens once."""
    return jnp.transpose(jnp.asarray(weight))


@functools.partial(
    jax.jit, static_argnames=("block_m", "block_n", "use_bf16_operands")
)
def linear_prep_forward(
    ids,
    feats,
    w_t,
    layer_idx=0,
    *,
    block_m=512,
    block_n=512,
    use_bf16_operands=False,
):
    """out = feats @ W.T with W pre-transposed to w_t = [D_in, D_out].

    ids / layer_idx are ignored, matching LinearPrep.forward semantics.
    """
    del ids, layer_idx
    n, d_in = feats.shape
    d_in_w, d_out = w_t.shape
    assert d_in == d_in_w

    tm = _pick_tile(n, block_m, 8)        # sublane-aligned feats/output tile
    tn = _pick_tile(d_out, block_n, 128)  # lane-aligned weight/output tile
    grid = (n // tm, d_out // tn)

    kernel = functools.partial(_linear_kernel, use_bf16_operands=use_bf16_operands)

    return pl.pallas_call(
        kernel,
        out_shape=jax.ShapeDtypeStruct((n, d_out), feats.dtype),
        grid_spec=pl.GridSpec(
            grid=grid,
            in_specs=[
                pl.BlockSpec((tm, d_in), lambda i, j: (i, 0)),
                pl.BlockSpec((d_in, tn), lambda i, j: (0, j)),
            ],
            out_specs=pl.BlockSpec((tm, tn), lambda i, j: (i, j)),
        ),
        compiler_params=pltpu.CompilerParams(
            # No carried reduction across grid steps -> both axes parallel
            # (megacore sharding on v7x; no-op on single-TC v5e/v6e).
            dimension_semantics=("parallel", "parallel"),
        ),
    )(feats, w_t)


if __name__ == "__main__":
    # Module config: LinearPrep(input_dim=16, n_nodes=8, output_dim=32)
    input_dim = 16
    n_nodes = 8
    output_dim = 32

    key = jax.random.PRNGKey(0)
    k_w, k_f, k_ids = jax.random.split(key, 3)

    # Deterministic parameter init (PyTorch Linear weight shape: [out, in]).
    bound = 1.0 / jnp.sqrt(input_dim)
    weight = jax.random.uniform(
        k_w, (output_dim, input_dim), dtype=jnp.float32,
        minval=-bound, maxval=bound,
    )

    feats = jax.random.normal(k_f, (n_nodes, input_dim), dtype=jnp.float32)
    ids = jax.random.randint(k_ids, (n_nodes,), 0, n_nodes)  # unused by forward

    # Hoisted one-time weight transpose (perf-review item).
    w_t = prepare_weight(weight)

    out = linear_prep_forward(ids, feats, w_t, 0)
    out = jax.block_until_ready(out)

    ref = feats @ weight.T
    assert out.shape == (n_nodes, output_dim)
    assert jnp.allclose(out, ref, atol=1e-5, rtol=1e-5)

    # Exercise the tiled multi-block path as well (still small/fast): this hits
    # a >1 grid with tm=512-aligned feats tiles and lane-aligned output tiles.
    n_big, d_out_big = 1024, 256
    k_fb, k_wb = jax.random.split(jax.random.PRNGKey(1))
    feats_big = jax.random.normal(k_fb, (n_big, input_dim), dtype=jnp.float32)
    weight_big = jax.random.uniform(
        k_wb, (d_out_big, input_dim), dtype=jnp.float32,
        minval=-bound, maxval=bound,
    )
    w_t_big = prepare_weight(weight_big)
    ids_big = jnp.arange(n_big, dtype=jnp.int32)
    out_big = jax.block_until_ready(
        linear_prep_forward(ids_big, feats_big, w_t_big, 0)
    )
    ref_big = feats_big @ weight_big.T
    assert out_big.shape == (n_big, d_out_big)
    assert jnp.allclose(out_big, ref_big, atol=1e-4, rtol=1e-4)

    print("KERNEL_OK")
</pallas_src>

<mosaic_0001>
module attributes {stable_mosaic.version = 11 : i64} {
  func.func @_linear_kernel(%arg0: i32, %arg1: i32, %arg2: memref<8x16xf32, #tpu.memory_space<vmem>>, %arg3: memref<16x32xf32, #tpu.memory_space<vmem>>, %arg4: memref<8x32xf32, #tpu.memory_space<vmem>>) attributes {dimension_semantics = [#tpu.dimension_semantics<parallel>, #tpu.dimension_semantics<parallel>], iteration_bounds = array<i64: 1, 1>, scalar_prefetch = 0 : i64, scratch_operands = 0 : i64, tpu.core_type = #tpu.core_type<tc>, window_params = [{transform_indices = @transform_0, window_bounds = array<i64: 8, 16>}, {transform_indices = @transform_1, window_bounds = array<i64: 16, 32>}, {transform_indices = @transform_2, window_bounds = array<i64: 8, 32>}]} {
    %c0 = arith.constant 0 : index
    %c0_0 = arith.constant 0 : index
    %0 = vector.load %arg2[%c0, %c0_0] : memref<8x16xf32, #tpu.memory_space<vmem>>, vector<8x16xf32>
    %c0_1 = arith.constant 0 : index
    %c0_2 = arith.constant 0 : index
    %1 = vector.load %arg3[%c0_1, %c0_2] : memref<16x32xf32, #tpu.memory_space<vmem>>, vector<16x32xf32>
    %cst = arith.constant dense<0.000000e+00> : vector<8x32xf32>
    %2 = tpu.matmul %0, %1, %cst {dimension_numbers = #tpu.dot_dimension_numbers<[1], [0], [0], [1], [0, 0, 1, 1], [], []>} : vector<8x16xf32>, vector<16x32xf32>, vector<8x32xf32> -> vector<8x32xf32>
    %c0_3 = arith.constant 0 : index
    %c0_4 = arith.constant 0 : index
    %3 = vector.load %arg4[%c0_3, %c0_4] : memref<8x32xf32, #tpu.memory_space<vmem>>, vector<8x32xf32>
    tpu.vector_store %arg4[%c0_3, %c0_4], %2 {strides = array<i32>} : memref<8x32xf32, #tpu.memory_space<vmem>>, vector<8x32xf32>,
    return
  }
  func.func @transform_0(%arg0: i32, %arg1: i32) -> (i32, i32) {
    %c0_i32 = arith.constant 0 : i32
    %c0_i32_0 = arith.constant 0 : i32
    return %arg0, %c0_i32 : i32, i32
  }
  func.func @transform_1(%arg0: i32, %arg1: i32) -> (i32, i32) {
    %c0_i32 = arith.constant 0 : i32
    %c0_i32_0 = arith.constant 0 : i32
    return %c0_i32, %arg1 : i32, i32
  }
  func.func @transform_2(%arg0: i32, %arg1: i32) -> (i32, i32) {
    %c0_i32 = arith.constant 0 : i32
    return %arg0, %arg1 : i32, i32
  }
}

</mosaic_0001>

<llo_original>
// kernel: linear_prep_forward.1
$region0: #{linear_prep_forward.1}
  #allocation0 [shape = 'u32[]', space=smem, size = 0x4, offset = 0x4, fixed_abs, tag = 'smem constant byte address 0x4 - core index']
  #allocation1 [shape = 'u32[144,128]{1,0:T(1,128)}', space=vmem, size = 0x12000, scoped, tag = 'internal scratch']
  %s0 = inlined_call_operand.hbm [shape: f32[8,16], index: 0, kind: input, shape index: {}]
  %s1 = inlined_call_operand.hbm [shape: f32[16,32], index: 1, kind: input, shape index: {}]
  %s2 = inlined_call_operand.hbm [shape: f32[8,32], index: 2, kind: output, shape index: {}]
  %s3 = sld [smem:[#allocation0]]
  $region26: #{linear_prep_forward.1} parent=0
    _
  %s5 = ssub.s32 1, %s3
  %s6 = scalar_select 0, %s5, %s3
  $region1: #{linear_prep_forward.1} parent=0
    #allocation2 [shape = 'u8[4096]{0}', space=vmem, size = 0x1000, scoped, tag = 'input window, operand 0, single buffered']
    #allocation3 [shape = 's32[1]{0}', space=sflag, size = 0x4, scoped, tag = 'scoped memory for linear_prep_forward.1']
    #allocation4 [shape = 's32[1]{0}', space=sflag, size = 0x4, scoped, tag = 'scoped memory for linear_prep_forward.1']
    #allocation5 [shape = 'u8[8192]{0}', space=vmem, size = 0x2000, scoped, tag = 'input window, operand 1, single buffered']
    #allocation6 [shape = 's32[1]{0}', space=sflag, size = 0x4, scoped, tag = 'scoped memory for linear_prep_forward.1']
    #allocation7 [shape = 'u8[4096]{0}', space=vmem, size = 0x1000, scoped, tag = 'output window, operand 0, single buffered']
    %7 = vsyncpa [#allocation3], 0
    %8 = vsyncpa [#allocation6], 0
    %9 = vsyncpa [#allocation4], 0
    // Predicated region
    $region2: #{linear_prep_forward.1} parent=1 // pred_check
      _
    $region3: #{linear_prep_forward.1} parent=1 // pred_check_branch
      %11 = sbr.rel (0) target = $region5
    $region4: #{linear_prep_forward.1} parent=1 // pred_region
      %s13 = ssub.s32 128, 128
      %14 = vsyncadd [#allocation3], %s13
      %s16 = sshll.u32 [#allocation2], 4
      %s17 = int_to_ptr.vmem [resolvable:$true] %s16
      %19 = dma.hbm_to_vmem [thread:$0]  %s0, 128, %s17, [#allocation3]
    $region5: #{linear_prep_forward.1} parent=1 // pred_fallthru
      _
    // Predicated region
    $region6: #{linear_prep_forward.1} parent=1 // pred_check
      _
    $region7: #{linear_prep_forward.1} parent=1 // pred_check_branch
      %21 = sbr.rel (0) target = $region9
    $region8: #{linear_prep_forward.1} parent=1 // pred_region
      %s23 = ssub.s32 256, 256
      %24 = vsyncadd [#allocation6], %s23
      %s25 = sshll.u32 [#allocation5], 4
      %s26 = int_to_ptr.vmem [resolvable:$true] %s25
      %31 = dma.hbm_to_vmem [thread:$0]  %s1, 256, %s26, [#allocation6], 128, 128, 8
    $region9: #{linear_prep_forward.1} parent=1 // pred_fallthru
      _
    // Predicated region
    $region10: #{linear_prep_forward.1} parent=1 // pred_check
      _
    $region11: #{linear_prep_forward.1} parent=1 // pred_check_branch
      %33 = sbr.rel (0) target = $region13
    $region12: #{linear_prep_forward.1} parent=1 // pred_region
      %34 = dma.done [#allocation3], 128
    $region13: #{linear_prep_forward.1} parent=1 // pred_fallthru
      _
    // Predicated region
    $region14: #{linear_prep_forward.1} parent=1 // pred_check
      _
    $region15: #{linear_prep_forward.1} parent=1 // pred_check_branch
      %36 = sbr.rel (0) target = $region17
    $region16: #{linear_prep_forward.1} parent=1 // pred_region
      %37 = dma.done [#allocation6], 256
    $region17: #{linear_prep_forward.1} parent=1 // pred_fallthru
      _
    %v38 = vld [vmem:[#allocation2] sm:$0xff]
    %v39 = vld [vmem:[#allocation5] sm:$0xff]
    %v40 = vld [vmem:[#allocation5 + $0x8] sm:$0xff]
    %vm41 = vcmask 130048
    %v43 = vsel %vm41, %v38, 0
    %45 = vmatprep.subr.mxu0 0.0
    %46 = vmatpush1.msra.mxu0 0.0
    %47 = vmatprep.subr.mxu0 0.0
    %48 = vmatpush1.msra.mxu0 0.0
    %49 = vmatprep.subr.mxu0 0.0
    %50 = vmatpush1.msra.mxu0 0.0
    %51 = vmatprep.subr.mxu0 0.0
    %52 = vmatpush1.msra.mxu0 0.0
    %53 = vmatprep.subr.mxu0 0.0
    %54 = vmatpush1.msra.mxu0 0.0
    %55 = vmatprep.subr.mxu0 0.0
    %56 = vmatpush1.msra.mxu0 0.0
    %57 = vmatprep.subr.mxu0 0.0
    %58 = vmatpush1.msra.mxu0 0.0
    %59 = vmatprep.subr.mxu0 0.0
    %60 = vmatpush1.msra.mxu0 0.0
    %61 = vmatprep.subr.mxu0 0.0
    %62 = vmatpush1.msra.mxu0 0.0
    %63 = vmatprep.subr.mxu0 0.0
    %64 = vmatpush1.msra.mxu0 0.0
    %65 = vmatprep.subr.mxu0 0.0
    %66 = vmatpush1.msra.mxu0 0.0
    %67 = vmatprep.subr.mxu0 0.0
    %68 = vmatpush1.msra.mxu0 0.0
    %69 = vmatprep.subr.mxu0 0.0
    %70 = vmatpush1.msra.mxu0 0.0
    %71 = vmatprep.subr.mxu0 0.0
    %72 = vmatpush1.msra.mxu0 0.0
    %73 = vmatprep.subr.mxu0 0.0
    %74 = vmatpush1.msra.mxu0 %v40
    %75 = vmatprep.subr.mxu0 0.0
    %76 = vmatpush1.msra.mxu0 %v39
    %77 = vmatprep.subr.mxu0 0.0
    %78 = vmatpush2.msra.mxu0 0.0
    %79 = vmatprep.subr.mxu0 0.0
    %80 = vmatpush2.msra.mxu0 0.0
    %81 = vmatprep.subr.mxu0 0.0
    %82 = vmatpush2.msra.mxu0 0.0
    %83 = vmatprep.subr.mxu0 0.0
    %84 = vmatpush2.msra.mxu0 0.0
    %85 = vmatprep.subr.mxu0 0.0
    %86 = vmatpush2.msra.mxu0 0.0
    %87 = vmatprep.subr.mxu0 0.0
    %88 = vmatpush2.msra.mxu0 0.0
    %89 = vmatprep.subr.mxu0 0.0
    %90 = vmatpush2.msra.mxu0 0.0
    %91 = vmatprep.subr.mxu0 0.0
    %92 = vmatpush2.msra.mxu0 0.0
    %93 = vmatprep.subr.mxu0 0.0
    %94 = vmatpush2.msra.mxu0 0.0
    %95 = vmatprep.subr.mxu0 0.0
    %96 = vmatpush2.msra.mxu0 0.0
    %97 = vmatprep.subr.mxu0 0.0
    %98 = vmatpush2.msra.mxu0 0.0
    %99 = vmatprep.subr.mxu0 0.0
    %100 = vmatpush2.msra.mxu0 0.0
    %101 = vmatprep.subr.mxu0 0.0
    %102 = vmatpush2.msra.mxu0 0.0
    %103 = vmatprep.subr.mxu0 0.0
    %104 = vmatpush2.msra.mxu0 0.0
    %105 = vmatprep.subr.mxu0 0.0
    %106 = vmatpush2.msra.mxu0 0.0
    %107 = vmatprep.subr.mxu0 0.0
    %108 = vmatpush2.msra.mxu0 0.0
    %109 = vmatprep.mubr.f32.mxu0 0.0
    %110 = vmatmul.mubr.f32.gmra.mxu0 %v43
    %v111 = vpop.f32.mrf.mxu0
    %v112 = vadd.f32 0.0, %v111
    %v113 = vpop.f32.mrf.mxu0
    %114 = vdwg.mxu0
    %vm115 = vcmask 261120
    %116 = vst.msk [vmem:[#allocation7] sm:$0xff] %vm115, %v112
    // Predicated region
    $region18: #{linear_prep_forward.1} parent=1 // pred_check
      _
    $region19: #{linear_prep_forward.1} parent=1 // pred_check_branch
      %118 = sbr.rel (0) target = $region21
    $region20: #{linear_prep_forward.1} parent=1 // pred_region
      %s120 = ssub.s32 128, 128
      %121 = vsyncadd [#allocation4], %s120
      %s123 = sshll.u32 [#allocation7], 4
      %s124 = int_to_ptr.vmem [resolvable:$true] %s123
      %126 = dma.vmem_to_hbm [thread:$0]  %s124, 128, %s2, [#allocation4]
    $region21: #{linear_prep_forward.1} parent=1 // pred_fallthru
      _
    // Predicated region
    $region22: #{linear_prep_forward.1} parent=1 // pred_check
      _
    $region23: #{linear_prep_forward.1} parent=1 // pred_check_branch
      %128 = sbr.rel (0) target = $region25
    $region24: #{linear_prep_forward.1} parent=1 // pred_region
      %129 = dma.done [#allocation4], 128
    $region25: #{linear_prep_forward.1} parent=1 // pred_fallthru
      _
    %130 = vsyncpa [#allocation3], 1
    %131 = vsyncpa [#allocation6], 1
    %132 = vsyncpa [#allocation4], 1

</llo_original>
